<compile_context>
chip_gen: v7x
topology: tpu7x:2x2x1
jax: 0.10.0
libtpu: 0.0.40
codegen_flags: <defaults>
</compile_context>

<pallas_src>
import functools

import jax
import jax.numpy as jnp
from jax import lax
from jax.experimental import pallas as pl
from jax.experimental.pallas import tpu as pltpu


def _head_kernel(x_ref, w_ref, o_ref,
                 k_sc, q_sc, v_sc, m_sc, l_sc, acc_sc, *,
                 head_size, block_kv, block_b):
    # x_ref:  (block_b, T, C)   resident across the KV grid axis
    # w_ref:  (C, 3H)           fused [Wk*scale | Wq | Wv], resident
    # o_ref:  (block_b, T, H)   written once, at the last KV step
    # k/q/v_sc: (block_b, T, H) f32 projections, computed once per batch block
    # m_sc/l_sc: (block_b, T, 1) f32 running max / running sum of exp
    # acc_sc: (block_b, T, H)   f32 un-normalized output accumulator
    H = head_size
    kv = pl.program_id(1)
    n_kv = pl.num_programs(1)
    T = x_ref.shape[1]
    C = x_ref.shape[2]

    @pl.when(kv == 0)
    def _init():
        # Single fused projection for the whole batch block: one MXU pass with
        # M = block_b*T rows and N = 3H columns.  The 1/sqrt(H) score scale is
        # pre-folded into the K columns of the fused weight.
        x2d = x_ref[...].reshape(block_b * T, C)
        kqv = jnp.dot(x2d, w_ref[...],
                      preferred_element_type=jnp.float32)        # (bB*T, 3H)
        kqv = kqv.reshape(block_b, T, 3 * H)
        k_sc[...] = kqv[:, :, :H]          # already scaled by head_size**-0.5
        q_sc[...] = kqv[:, :, H:2 * H]
        v_sc[...] = kqv[:, :, 2 * H:]
        m_sc[...] = jnp.full((block_b, T, 1), -jnp.inf, dtype=jnp.float32)
        l_sc[...] = jnp.zeros((block_b, T, 1), dtype=jnp.float32)
        acc_sc[...] = jnp.zeros((block_b, T, H), dtype=jnp.float32)

    start = pl.multiple_of(kv * block_kv, block_kv)

    k_all = k_sc[...]                                   # (bB, T, H)
    q_c = q_sc[:, pl.ds(start, block_kv), :]            # (bB, bk, H)
    v_c = v_sc[:, pl.ds(start, block_kv), :]            # (bB, bk, H)

    # s[b, i, j] = k[b, i] . q[b, start + j]  (matches the reference's k @ q^T
    # ordering); contract the H axes directly -> no transposed copy of q.
    s = lax.dot_general(k_all, q_c,
                        dimension_numbers=(((2,), (2,)), ((0,), (0,))),
                        preferred_element_type=jnp.float32)       # (bB, T, bk)

    # Causal mask: keep (global) column j <= row i; identical for every batch
    # element in the block, so build it 2-D and broadcast.
    row = lax.broadcasted_iota(jnp.int32, (T, block_kv), 0)
    col = lax.broadcasted_iota(jnp.int32, (T, block_kv), 1) + start
    s = jnp.where((col <= row)[None, :, :], s, -jnp.inf)

    # Online softmax update (flash style) over the KV/column grid axis.
    m_prev = m_sc[...]
    m_new = jnp.maximum(m_prev, jnp.max(s, axis=-1, keepdims=True))  # (bB, T, 1)
    alpha = jnp.exp(m_prev - m_new)                                  # (bB, T, 1)
    p = jnp.exp(s - m_new)                                           # (bB, T, bk)
    l_sc[...] = alpha * l_sc[...] + jnp.sum(p, axis=-1, keepdims=True)
    acc_sc[...] = alpha * acc_sc[...] + lax.dot_general(
        p, v_c,
        dimension_numbers=(((2,), (1,)), ((0,), (0,))),
        preferred_element_type=jnp.float32)                          # (bB, T, H)
    m_sc[...] = m_new

    @pl.when(kv == n_kv - 1)
    def _finalize():
        inv_l = pl.reciprocal(l_sc[...], approx=True)   # EUP slot, VALU-free
        o_ref[...] = (acc_sc[...] * inv_l).astype(o_ref.dtype)


def head_forward(x, wk, wq, wv, head_size, *, block_kv=None, block_b=None):
    """x: (B, T, C) f32; wk/wq/wv: (head_size, C) f32 (PyTorch nn.Linear layout)."""
    B, T, C = x.shape
    H = head_size
    assert wk.shape == (H, C) and wq.shape == (H, C) and wv.shape == (H, C)

    # Glue (outside the kernel): fuse the three projection weights into a single
    # (C, 3H) operand and fold the 1/sqrt(H) score scale into the K columns.
    scale = jnp.float32(H) ** jnp.float32(-0.5)
    w_fused = jnp.concatenate([wk.T * scale, wq.T, wv.T], axis=1)   # (C, 3H)

    if block_kv is None:
        block_kv = min(T, 512)
    if T % block_kv != 0:
        block_kv = T
    n_kv = T // block_kv

    if block_b is None:
        # Largest power-of-two batch block that divides B and keeps the live
        # f32 working set (k/q/v/acc scratch, padded m/l, score temporaries)
        # comfortably inside VMEM.
        block_b = 1
        for cand in (16, 8, 4, 2, 1):
            if B % cand == 0:
                live = 4 * cand * T * (4 * H + 2 * 128 + 2 * block_kv)
                if live <= 8 * 2**20:
                    block_b = cand
                    break
    if B % block_b != 0:
        block_b = 1
    n_b = B // block_b

    kernel = functools.partial(_head_kernel, head_size=H,
                               block_kv=block_kv, block_b=block_b)

    # Rough working-set estimate (bytes) -> scoped VMEM limit with headroom,
    # capped below v7x physical VMEM (64 MiB).
    est = 4 * (2 * block_b * T * C            # x double buffer
               + 2 * C * 3 * H                # weight double buffer
               + 2 * block_b * T * H          # output double buffer
               + 4 * block_b * T * H          # k/q/v/acc scratch
               + 2 * block_b * T * 128        # m/l scratch (lane padded)
               + 4 * block_b * T * block_kv)  # live (bB, T, bk) temporaries
    vmem_limit = int(min(48 * 2**20, max(16 * 2**20, 2 * est)))

    return pl.pallas_call(
        kernel,
        out_shape=jax.ShapeDtypeStruct((B, T, H), jnp.float32),
        grid_spec=pltpu.PrefetchScalarGridSpec(
            num_scalar_prefetch=0,
            grid=(n_b, n_kv),
            in_specs=[
                pl.BlockSpec((block_b, T, C), lambda b, kv: (b, 0, 0)),  # resident per b
                pl.BlockSpec((C, 3 * H), lambda b, kv: (0, 0)),          # resident
            ],
            out_specs=pl.BlockSpec((block_b, T, H), lambda b, kv: (b, 0, 0)),
            scratch_shapes=[
                pltpu.VMEM((block_b, T, H), jnp.float32),   # k (pre-scaled)
                pltpu.VMEM((block_b, T, H), jnp.float32),   # q
                pltpu.VMEM((block_b, T, H), jnp.float32),   # v
                pltpu.VMEM((block_b, T, 1), jnp.float32),   # running max
                pltpu.VMEM((block_b, T, 1), jnp.float32),   # running sum
                pltpu.VMEM((block_b, T, H), jnp.float32),   # output accumulator
            ],
        ),
        compiler_params=pltpu.CompilerParams(
            dimension_semantics=("parallel", "arbitrary"),
            vmem_limit_bytes=vmem_limit,
        ),
    )(x, w_fused)


def head_reference(x, wk, wq, wv, head_size):
    """Pure-JAX reference mirroring the PyTorch forward exactly."""
    k = x @ wk.T
    q = x @ wq.T
    v = x @ wv.T
    affin = (k @ jnp.swapaxes(q, -2, -1)) * (head_size ** -0.5)
    T = x.shape[1]
    tril = jnp.tril(jnp.ones((T, T), dtype=jnp.float32))
    affin = jnp.where(tril == 0, -jnp.inf, affin)
    wei = jax.nn.softmax(affin, axis=-1)
    return wei @ v


def _run_case(key, B, T, C, H, block_kv=None, block_b=None):
    kx, kk, kq, kv = jax.random.split(key, 4)
    x = jax.random.normal(kx, (B, T, C), dtype=jnp.float32)
    # Deterministic "nn.Linear(n_embd, head_size, bias=False)" weights: (H, C).
    wk = jax.random.normal(kk, (H, C), dtype=jnp.float32) * 0.1
    wq = jax.random.normal(kq, (H, C), dtype=jnp.float32) * 0.1
    wv = jax.random.normal(kv, (H, C), dtype=jnp.float32) * 0.1

    out = head_forward(x, wk, wq, wv, H, block_kv=block_kv, block_b=block_b)
    out = jax.block_until_ready(out)
    ref = head_reference(x, wk, wq, wv, H)
    assert out.shape == (B, T, H)
    # Tolerance accounts for the EUP approximate reciprocal in the softmax.
    assert jnp.allclose(out, ref, atol=5e-3, rtol=5e-3), (
        f"max abs err {jnp.max(jnp.abs(out - ref))}")


if __name__ == "__main__":
    key = jax.random.PRNGKey(0)
    k1, k2, k3 = jax.random.split(key, 3)
    # Small demo shapes consistent with the module: n_embd=32, head_size=16.
    _run_case(k1, B=2, T=8, C=32, H=16)
    # Multi-KV-block online-softmax path at the module's BLOCK_SIZE.
    _run_case(k2, B=2, T=256, C=32, H=16, block_kv=128)
    # Batch-blocked single-pass path (several batch elements per grid step).
    _run_case(k3, B=4, T=256, C=32, H=16)
    print("KERNEL_OK")
</pallas_src>

<mosaic_0001>
module attributes {stable_mosaic.version = 11 : i64} {
  func.func @_head_kernel(%arg0: i32, %arg1: i32, %arg2: memref<2x8x32xf32, #tpu.memory_space<vmem>>, %arg3: memref<32x48xf32, #tpu.memory_space<vmem>>, %arg4: memref<2x8x16xf32, #tpu.memory_space<vmem>>, %arg5: memref<2x8x16xf32, #tpu.memory_space<vmem>>, %arg6: memref<2x8x16xf32, #tpu.memory_space<vmem>>, %arg7: memref<2x8x16xf32, #tpu.memory_space<vmem>>, %arg8: memref<2x8x1xf32, #tpu.memory_space<vmem>>, %arg9: memref<2x8x1xf32, #tpu.memory_space<vmem>>, %arg10: memref<2x8x16xf32, #tpu.memory_space<vmem>>) attributes {dimension_semantics = [#tpu.dimension_semantics<parallel>, #tpu.dimension_semantics<arbitrary>], iteration_bounds = array<i64: 1, 1>, scalar_prefetch = 0 : i64, scratch_operands = 6 : i64, tpu.core_type = #tpu.core_type<tc>, window_params = [{transform_indices = @transform_0, window_bounds = array<i64: 2, 8, 32>}, {pipeline_mode = #tpu.pipeline_mode<synchronous>, transform_indices = @transform_1, window_bounds = array<i64: 32, 48>}, {transform_indices = @transform_2, window_bounds = array<i64: 2, 8, 16>}]} {
    %c0_i32 = arith.constant 0 : i32
    %0 = arith.cmpi eq, %arg1, %c0_i32 : i32
    %1 = arith.extui %0 : i1 to i32
    %c0_i32_0 = arith.constant 0 : i32
    %2 = arith.cmpi ne, %1, %c0_i32_0 : i32
    scf.if %2 {
      %c0_31 = arith.constant 0 : index
      %c0_32 = arith.constant 0 : index
      %c0_33 = arith.constant 0 : index
      %46 = vector.load %arg2[%c0_31, %c0_32, %c0_33] : memref<2x8x32xf32, #tpu.memory_space<vmem>>, vector<2x8x32xf32>
      %47 = vector.shape_cast %46 : vector<2x8x32xf32> to vector<16x32xf32>
      %c0_34 = arith.constant 0 : index
      %c0_35 = arith.constant 0 : index
      %48 = vector.load %arg3[%c0_34, %c0_35] : memref<32x48xf32, #tpu.memory_space<vmem>>, vector<32x48xf32>
      %cst_36 = arith.constant dense<0.000000e+00> : vector<16x48xf32>
      %49 = tpu.matmul %47, %48, %cst_36 {dimension_numbers = #tpu.dot_dimension_numbers<[1], [0], [0], [1], [0, 0, 1, 1], [], []>} : vector<16x32xf32>, vector<32x48xf32>, vector<16x48xf32> -> vector<16x48xf32>
      %50 = vector.shape_cast %49 : vector<16x48xf32> to vector<2x8x48xf32>
      %51 = vector.extract_strided_slice %50 {offsets = [0, 0, 0], sizes = [2, 8, 16], strides = [1, 1, 1]} : vector<2x8x48xf32> to vector<2x8x16xf32>
      %c0_37 = arith.constant 0 : index
      %c0_38 = arith.constant 0 : index
      %c0_39 = arith.constant 0 : index
      %52 = vector.load %arg5[%c0_37, %c0_38, %c0_39] : memref<2x8x16xf32, #tpu.memory_space<vmem>>, vector<2x8x16xf32>
      tpu.vector_store %arg5[%c0_37, %c0_38, %c0_39], %51 {strides = array<i32>} : memref<2x8x16xf32, #tpu.memory_space<vmem>>, vector<2x8x16xf32>,
      %53 = vector.extract_strided_slice %50 {offsets = [0, 0, 16], sizes = [2, 8, 16], strides = [1, 1, 1]} : vector<2x8x48xf32> to vector<2x8x16xf32>
      %c0_40 = arith.constant 0 : index
      %c0_41 = arith.constant 0 : index
      %c0_42 = arith.constant 0 : index
      %54 = vector.load %arg6[%c0_40, %c0_41, %c0_42] : memref<2x8x16xf32, #tpu.memory_space<vmem>>, vector<2x8x16xf32>
      tpu.vector_store %arg6[%c0_40, %c0_41, %c0_42], %53 {strides = array<i32>} : memref<2x8x16xf32, #tpu.memory_space<vmem>>, vector<2x8x16xf32>,
      %55 = vector.extract_strided_slice %50 {offsets = [0, 0, 32], sizes = [2, 8, 16], strides = [1, 1, 1]} : vector<2x8x48xf32> to vector<2x8x16xf32>
      %c0_43 = arith.constant 0 : index
      %c0_44 = arith.constant 0 : index
      %c0_45 = arith.constant 0 : index
      %56 = vector.load %arg7[%c0_43, %c0_44, %c0_45] : memref<2x8x16xf32, #tpu.memory_space<vmem>>, vector<2x8x16xf32>
      tpu.vector_store %arg7[%c0_43, %c0_44, %c0_45], %55 {strides = array<i32>} : memref<2x8x16xf32, #tpu.memory_space<vmem>>, vector<2x8x16xf32>,
      %cst_46 = arith.constant 0xFF800000 : f32
      %57 = vector.broadcast %cst_46 : f32 to vector<2x8x1xf32>
      %c0_47 = arith.constant 0 : index
      %c0_48 = arith.constant 0 : index
      %c0_49 = arith.constant 0 : index
      %58 = vector.load %arg8[%c0_47, %c0_48, %c0_49] : memref<2x8x1xf32, #tpu.memory_space<vmem>>, vector<2x8x1xf32>
      tpu.vector_store %arg8[%c0_47, %c0_48, %c0_49], %57 {strides = array<i32>} : memref<2x8x1xf32, #tpu.memory_space<vmem>>, vector<2x8x1xf32>,
      %cst_50 = arith.constant 0.000000e+00 : f32
      %59 = vector.broadcast %cst_50 : f32 to vector<2x8x1xf32>
      %c0_51 = arith.constant 0 : index
      %c0_52 = arith.constant 0 : index
      %c0_53 = arith.constant 0 : index
      %60 = vector.load %arg9[%c0_51, %c0_52, %c0_53] : memref<2x8x1xf32, #tpu.memory_space<vmem>>, vector<2x8x1xf32>
      tpu.vector_store %arg9[%c0_51, %c0_52, %c0_53], %59 {strides = array<i32>} : memref<2x8x1xf32, #tpu.memory_space<vmem>>, vector<2x8x1xf32>,
      %cst_54 = arith.constant 0.000000e+00 : f32
      %61 = vector.broadcast %cst_54 : f32 to vector<2x8x16xf32>
      %c0_55 = arith.constant 0 : index
      %c0_56 = arith.constant 0 : index
      %c0_57 = arith.constant 0 : index
      %62 = vector.load %arg10[%c0_55, %c0_56, %c0_57] : memref<2x8x16xf32, #tpu.memory_space<vmem>>, vector<2x8x16xf32>
      tpu.vector_store %arg10[%c0_55, %c0_56, %c0_57], %61 {strides = array<i32>} : memref<2x8x16xf32, #tpu.memory_space<vmem>>, vector<2x8x16xf32>,
    } else {
    }
    %c8_i32 = arith.constant 8 : i32
    %3 = arith.muli %arg1, %c8_i32 : i32
    %4 = tpu.assume_multiple %3, 8 : i32
    %c0 = arith.constant 0 : index
    %c0_1 = arith.constant 0 : index
    %c0_2 = arith.constant 0 : index
    %5 = vector.load %arg5[%c0, %c0_1, %c0_2] : memref<2x8x16xf32, #tpu.memory_space<vmem>>, vector<2x8x16xf32>
    %c0_3 = arith.constant 0 : index
    %6 = arith.index_cast %4 : i32 to index
    %c0_4 = arith.constant 0 : index
    %7 = vector.load %arg6[%c0_3, %6, %c0_4] : memref<2x8x16xf32, #tpu.memory_space<vmem>>, vector<2x8x16xf32>
    %c0_5 = arith.constant 0 : index
    %8 = arith.index_cast %4 : i32 to index
    %c0_6 = arith.constant 0 : index
    %9 = vector.load %arg7[%c0_5, %8, %c0_6] : memref<2x8x16xf32, #tpu.memory_space<vmem>>, vector<2x8x16xf32>
    %cst = arith.constant dense<0.000000e+00> : vector<2x8x8xf32>
    %10 = tpu.matmul %5, %7, %cst {dimension_numbers = #tpu.dot_dimension_numbers<[2], [2], [1], [1], [0, 0, 0, 1, 1, 1], [0], [0]>} : vector<2x8x16xf32>, vector<2x8x16xf32>, vector<2x8x8xf32> -> vector<2x8x8xf32>
    %11 = tpu.iota {dimensions = array<i32: 0>} : vector<8x8xi32>
    %12 = tpu.iota {dimensions = array<i32: 1>} : vector<8x8xi32>
    %13 = vector.broadcast %4 : i32 to vector<8x8xi32>
    %14 = arith.addi %12, %13 : vector<8x8xi32>
    %15 = arith.cmpi sle, %14, %11 : vector<8x8xi32>
    %16 = vector.shape_cast %15 : vector<8x8xi1> to vector<1x8x8xi1>
    %cst_7 = arith.constant 0xFF800000 : f32
    %17 = vector.shape_cast %16 : vector<1x8x8xi1> to vector<1x8x8xi1>
    %18 = vector.broadcast %17 : vector<1x8x8xi1> to vector<2x8x8xi1>
    %19 = vector.broadcast %cst_7 : f32 to vector<2x8x8xf32>
    %20 = arith.select %18, %10, %19 : vector<2x8x8xi1>, vector<2x8x8xf32>
    %c0_8 = arith.constant 0 : index
    %c0_9 = arith.constant 0 : index
    %c0_10 = arith.constant 0 : index
    %21 = vector.load %arg8[%c0_8, %c0_9, %c0_10] : memref<2x8x1xf32, #tpu.memory_space<vmem>>, vector<2x8x1xf32>
    %cst_11 = arith.constant dense<0xFF800000> : vector<2x8xf32>
    %22 = vector.multi_reduction <maximumf>, %20, %cst_11 [2] : vector<2x8x8xf32> to vector<2x8xf32>
    %23 = vector.shape_cast %22 : vector<2x8xf32> to vector<2x8x1xf32>
    %24 = arith.maximumf %21, %23 : vector<2x8x1xf32>
    %25 = arith.subf %21, %24 : vector<2x8x1xf32>
    %26 = math.exp %25 : vector<2x8x1xf32>
    %27 = vector.broadcast %24 : vector<2x8x1xf32> to vector<2x8x8xf32>
    %28 = arith.subf %20, %27 : vector<2x8x8xf32>
    %29 = math.exp %28 : vector<2x8x8xf32>
    %c0_12 = arith.constant 0 : index
    %c0_13 = arith.constant 0 : index
    %c0_14 = arith.constant 0 : index
    %30 = vector.load %arg9[%c0_12, %c0_13, %c0_14] : memref<2x8x1xf32, #tpu.memory_space<vmem>>, vector<2x8x1xf32>
    %31 = arith.mulf %26, %30 : vector<2x8x1xf32>
    %cst_15 = arith.constant dense<0.000000e+00> : vector<2x8xf32>
    %32 = vector.multi_reduction <add>, %29, %cst_15 [2] : vector<2x8x8xf32> to vector<2x8xf32>
    %33 = vector.shape_cast %32 : vector<2x8xf32> to vector<2x8x1xf32>
    %34 = arith.addf %31, %33 : vector<2x8x1xf32>
    %c0_16 = arith.constant 0 : index
    %c0_17 = arith.constant 0 : index
    %c0_18 = arith.constant 0 : index
    %35 = vector.load %arg9[%c0_16, %c0_17, %c0_18] : memref<2x8x1xf32, #tpu.memory_space<vmem>>, vector<2x8x1xf32>
    tpu.vector_store %arg9[%c0_16, %c0_17, %c0_18], %34 {strides = array<i32>} : memref<2x8x1xf32, #tpu.memory_space<vmem>>, vector<2x8x1xf32>,
    %c0_19 = arith.constant 0 : index
    %c0_20 = arith.constant 0 : index
    %c0_21 = arith.constant 0 : index
    %36 = vector.load %arg10[%c0_19, %c0_20, %c0_21] : memref<2x8x16xf32, #tpu.memory_space<vmem>>, vector<2x8x16xf32>
    %37 = vector.broadcast %26 : vector<2x8x1xf32> to vector<2x8x16xf32>
    %38 = arith.mulf %37, %36 : vector<2x8x16xf32>
    %cst_22 = arith.constant dense<0.000000e+00> : vector<2x8x16xf32>
    %39 = tpu.matmul %29, %9, %cst_22 {dimension_numbers = #tpu.dot_dimension_numbers<[2], [1], [1], [2], [0, 0, 0, 1, 1, 2], [0], [0]>} : vector<2x8x8xf32>, vector<2x8x16xf32>, vector<2x8x16xf32> -> vector<2x8x16xf32>
    %40 = arith.addf %38, %39 : vector<2x8x16xf32>
    %c0_23 = arith.constant 0 : index
    %c0_24 = arith.constant 0 : index
    %c0_25 = arith.constant 0 : index
    %41 = vector.load %arg10[%c0_23, %c0_24, %c0_25] : memref<2x8x16xf32, #tpu.memory_space<vmem>>, vector<2x8x16xf32>
    tpu.vector_store %arg10[%c0_23, %c0_24, %c0_25], %40 {strides = array<i32>} : memref<2x8x16xf32, #tpu.memory_space<vmem>>, vector<2x8x16xf32>,
    %c0_26 = arith.constant 0 : index
    %c0_27 = arith.constant 0 : index
    %c0_28 = arith.constant 0 : index
    %42 = vector.load %arg8[%c0_26, %c0_27, %c0_28] : memref<2x8x1xf32, #tpu.memory_space<vmem>>, vector<2x8x1xf32>
    tpu.vector_store %arg8[%c0_26, %c0_27, %c0_28], %24 {strides = array<i32>} : memref<2x8x1xf32, #tpu.memory_space<vmem>>, vector<2x8x1xf32>,
    %c0_i32_29 = arith.constant 0 : i32
    %43 = arith.cmpi eq, %arg1, %c0_i32_29 : i32
    %44 = arith.extui %43 : i1 to i32
    %c0_i32_30 = arith.constant 0 : i32
    %45 = arith.cmpi ne, %44, %c0_i32_30 : i32
    scf.if %45 {
      %c0_31 = arith.constant 0 : index
      %c0_32 = arith.constant 0 : index
      %c0_33 = arith.constant 0 : index
      %46 = vector.load %arg9[%c0_31, %c0_32, %c0_33] : memref<2x8x1xf32, #tpu.memory_space<vmem>>, vector<2x8x1xf32>
      %47 = tpu.reciprocal %46 {approx = true} : vector<2x8x1xf32> -> vector<2x8x1xf32>
      %c0_34 = arith.constant 0 : index
      %c0_35 = arith.constant 0 : index
      %c0_36 = arith.constant 0 : index
      %48 = vector.load %arg10[%c0_34, %c0_35, %c0_36] : memref<2x8x16xf32, #tpu.memory_space<vmem>>, vector<2x8x16xf32>
      %49 = vector.broadcast %47 : vector<2x8x1xf32> to vector<2x8x16xf32>
      %50 = arith.mulf %48, %49 : vector<2x8x16xf32>
      %c0_37 = arith.constant 0 : index
      %c0_38 = arith.constant 0 : index
      %c0_39 = arith.constant 0 : index
      %51 = vector.load %arg4[%c0_37, %c0_38, %c0_39] : memref<2x8x16xf32, #tpu.memory_space<vmem>>, vector<2x8x16xf32>
      tpu.vector_store %arg4[%c0_37, %c0_38, %c0_39], %50 {strides = array<i32>} : memref<2x8x16xf32, #tpu.memory_space<vmem>>, vector<2x8x16xf32>,
    } else {
    }
    return
  }
  func.func @transform_0(%arg0: i32, %arg1: i32) -> (i32, i32, i32) {
    %c0_i32 = arith.constant 0 : i32
    %c0_i32_0 = arith.constant 0 : i32
    %c0_i32_1 = arith.constant 0 : i32
    return %arg0, %c0_i32, %c0_i32_0 : i32, i32, i32
  }
  func.func @transform_1(%arg0: i32, %arg1: i32) -> (i32, i32) {
    %c0_i32 = arith.constant 0 : i32
    %c0_i32_0 = arith.constant 0 : i32
    %c0_i32_1 = arith.constant 0 : i32
    return %c0_i32, %c0_i32_0 : i32, i32
  }
  func.func @transform_2(%arg0: i32, %arg1: i32) -> (i32, i32, i32) {
    %c0_i32 = arith.constant 0 : i32
    %c0_i32_0 = arith.constant 0 : i32
    %c0_i32_1 = arith.constant 0 : i32
    return %arg0, %c0_i32, %c0_i32_0 : i32, i32, i32
  }
}

</mosaic_0001>

<llo_original>
// kernel: tpu_custom_call.1
$region0: #{tpu_custom_call.1}
  #allocation0 [shape = 'u32[]', space=smem, size = 0x4, offset = 0x4, fixed_abs, tag = 'smem constant byte address 0x4 - core index']
  #allocation1 [shape = 'u32[144,128]{1,0:T(1,128)}', space=vmem, size = 0x12000, scoped, tag = 'internal scratch']
  #allocation2 [shape = 'f32[2,8,16]{2,1,0:T(8,128)}', space=vmem, size = 0x2000, scoped, tag = 'scratch operand']
  #allocation3 [shape = 'f32[2,8,16]{2,1,0:T(8,128)}', space=vmem, size = 0x2000, scoped, tag = 'scratch operand']
  #allocation4 [shape = 'f32[2,8,16]{2,1,0:T(8,128)}', space=vmem, size = 0x2000, scoped, tag = 'scratch operand']
  #allocation5 [shape = 'f32[2,8,1]{2,1,0:T(8,128)}', space=vmem, size = 0x2000, scoped, tag = 'scratch operand']
  #allocation6 [shape = 'f32[2,8,1]{2,1,0:T(8,128)}', space=vmem, size = 0x2000, scoped, tag = 'scratch operand']
  #allocation7 [shape = 'f32[2,8,16]{2,1,0:T(8,128)}', space=vmem, size = 0x2000, scoped, tag = 'scratch operand']
  %s0 = inlined_call_operand.hbm [shape: f32[2,8,32], index: 0, kind: input, shape index: {}]
  %s1 = inlined_call_operand.hbm [shape: f32[32,48], index: 1, kind: input, shape index: {}]
  %s2 = inlined_call_operand.hbm [shape: f32[2,8,16], index: 2, kind: output, shape index: {}]
  %s3 = sld [smem:[#allocation0]]
  $region34: #{tpu_custom_call.1} parent=0
    _
  %s5 = ssub.s32 1, %s3
  %s6 = scalar_select 0, %s5, %s3
  $region1: #{tpu_custom_call.1} parent=0
    #allocation8 [shape = 'u8[8192]{0}', space=vmem, size = 0x2000, scoped, tag = 'input window, operand 0, single buffered']
    #allocation9 [shape = 's32[1]{0}', space=sflag, size = 0x4, scoped, tag = 'scoped memory for tpu_custom_call.1']
    #allocation10 [shape = 's32[1]{0}', space=sflag, size = 0x4, scoped, tag = 'scoped memory for tpu_custom_call.1']
    #allocation11 [shape = 'u8[16384]{0}', space=vmem, size = 0x4000, scoped, tag = 'input window, operand 1, single buffered']
    #allocation12 [shape = 's32[1]{0}', space=sflag, size = 0x4, scoped, tag = 'scoped memory for tpu_custom_call.1']
    #allocation13 [shape = 'u8[8192]{0}', space=vmem, size = 0x2000, scoped, tag = 'output window, operand 0, single buffered']
    %7 = vsyncpa [#allocation9], 0
    %8 = vsyncpa [#allocation12], 0
    %9 = vsyncpa [#allocation10], 0
    // Predicated region
    $region2: #{tpu_custom_call.1} parent=1 // pred_check
      _
    $region3: #{tpu_custom_call.1} parent=1 // pred_check_branch
      %11 = sbr.rel (0) target = $region5
    $region4: #{tpu_custom_call.1} parent=1 // pred_region
      %s13 = ssub.s32 256, 256
      %14 = vsyncadd [#allocation9], %s13
      %s15 = sshll.u32 [#allocation8], 4
      %s16 = int_to_ptr.vmem [resolvable:$true] %s15
      %21 = dma.hbm_to_vmem [thread:$0]  %s0, 256, %s16, [#allocation9], 128, 128, 8
    $region5: #{tpu_custom_call.1} parent=1 // pred_fallthru
      _
    // Predicated region
    $region6: #{tpu_custom_call.1} parent=1 // pred_check
      _
    $region7: #{tpu_custom_call.1} parent=1 // pred_check_branch
      %23 = sbr.rel (0) target = $region9
    $region8: #{tpu_custom_call.1} parent=1 // pred_region
      %s25 = ssub.s32 512, 512
      %26 = vsyncadd [#allocation12], %s25
      %s27 = sshll.u32 [#allocation11], 4
      %s28 = int_to_ptr.vmem [resolvable:$true] %s27
      %33 = dma.hbm_to_vmem [thread:$0]  %s1, 512, %s28, [#allocation12], 128, 128, 8
    $region9: #{tpu_custom_call.1} parent=1 // pred_fallthru
      _
    // Predicated region
    $region10: #{tpu_custom_call.1} parent=1 // pred_check
      _
    $region11: #{tpu_custom_call.1} parent=1 // pred_check_branch
      %35 = sbr.rel (0) target = $region13
    $region12: #{tpu_custom_call.1} parent=1 // pred_region
      %36 = dma.done [#allocation9], 256
    $region13: #{tpu_custom_call.1} parent=1 // pred_fallthru
      _
    // Predicated region
    $region14: #{tpu_custom_call.1} parent=1 // pred_check
      _
    $region15: #{tpu_custom_call.1} parent=1 // pred_check_branch
      %38 = sbr.rel (0) target = $region17
    $region16: #{tpu_custom_call.1} parent=1 // pred_region
      %39 = dma.done [#allocation12], 512
    $region17: #{tpu_custom_call.1} parent=1 // pred_fallthru
      _
    %p40 = scmp.eq.s32.totalorder 0, 0
    // Predicated region
    $region18: #{tpu_custom_call.1} parent=1 // pred_check
      %p41 = pneg %p40
    $region19: #{tpu_custom_call.1} parent=1 // pred_check_branch
      %43 = sbr.rel (%p41) target = $region21
    $region20: #{tpu_custom_call.1} parent=1 // pred_region
      %v44 = vld [vmem:[#allocation8] sm:$0xff]
      %v45 = vld [vmem:[#allocation8 + $0x8] sm:$0xff]
      %v46 = vld [vmem:[#allocation11] sm:$0xff]
      %v47 = vld [vmem:[#allocation11 + $0x8] sm:$0xff]
      %v48 = vld [vmem:[#allocation11 + $0x10] sm:$0xff]
      %v49 = vld [vmem:[#allocation11 + $0x18] sm:$0xff]
      %vm50 = vcmask 261120
      %v52 = vsel %vm50, %v44, 0
      %v55 = vsel %vm50, %v45, 0
      %57 = vmatprep.subr.mxu0 0.0
      %58 = vmatpush1.msra.mxu0 %v46
      %59 = vmatprep.subr.mxu0 0.0
      %60 = vmatpush1.msra.mxu0 %v47
      %61 = vmatprep.subr.mxu0 0.0
      %62 = vmatpush1.msra.mxu0 %v48
      %63 = vmatprep.subr.mxu0 0.0
      %64 = vmatpush1.msra.mxu0 %v49
      %65 = vmatprep.subr.mxu0 0.0
      %66 = vmatpush1.msra.mxu0 0.0
      %67 = vmatprep.subr.mxu0 0.0
      %68 = vmatpush1.msra.mxu0 0.0
      %69 = vmatprep.subr.mxu0 0.0
      %70 = vmatpush1.msra.mxu0 0.0
      %71 = vmatprep.subr.mxu0 0.0
      %72 = vmatpush1.msra.mxu0 0.0
      %73 = vmatprep.subr.mxu0 0.0
      %74 = vmatpush1.msra.mxu0 0.0
      %75 = vmatprep.subr.mxu0 0.0
      %76 = vmatpush1.msra.mxu0 0.0
      %77 = vmatprep.subr.mxu0 0.0
      %78 = vmatpush1.msra.mxu0 0.0
      %79 = vmatprep.subr.mxu0 0.0
      %80 = vmatpush1.msra.mxu0 0.0
      %81 = vmatprep.subr.mxu0 0.0
      %82 = vmatpush1.msra.mxu0 0.0
      %83 = vmatprep.subr.mxu0 0.0
      %84 = vmatpush1.msra.mxu0 0.0
      %85 = vmatprep.subr.mxu0 0.0
      %86 = vmatpush1.msra.mxu0 0.0
      %87 = vmatprep.subr.mxu0 0.0
      %88 = vmatpush1.msra.mxu0 0.0
      %89 = vmatprep.subr.mxu0 0.0
      %90 = vmatpush1.msra.mxu0 0.0
      %91 = vmatprep.subr.mxu0 0.0
      %92 = vmatpush1.msra.mxu0 0.0
      %93 = vmatprep.subr.mxu0 0.0
      %94 = vmatpush1.msra.mxu0 0.0
      %95 = vmatprep.subr.mxu0 0.0
      %96 = vmatpush1.msra.mxu0 0.0
      %97 = vmatprep.subr.mxu0 0.0
      %98 = vmatpush1.msra.mxu0 0.0
      %99 = vmatprep.subr.mxu0 0.0
      %100 = vmatpush1.msra.mxu0 0.0
      %101 = vmatprep.subr.mxu0 0.0
      %102 = vmatpush1.msra.mxu0 0.0
      %103 = vmatprep.subr.mxu0 0.0
      %104 = vmatpush1.msra.mxu0 0.0
      %105 = vmatprep.subr.mxu0 0.0
      %106 = vmatpush1.msra.mxu0 0.0
      %107 = vmatprep.subr.mxu0 0.0
      %108 = vmatpush1.msra.mxu0 0.0
      %109 = vmatprep.subr.mxu0 0.0
      %110 = vmatpush1.msra.mxu0 0.0
      %111 = vmatprep.subr.mxu0 0.0
      %112 = vmatpush1.msra.mxu0 0.0
      %113 = vmatprep.subr.mxu0 0.0
      %114 = vmatpush1.msra.mxu0 0.0
      %115 = vmatprep.subr.mxu0 0.0
      %116 = vmatpush1.msra.mxu0 0.0
      %117 = vmatprep.subr.mxu0 0.0
      %118 = vmatpush1.msra.mxu0 0.0
      %119 = vmatprep.subr.mxu0 0.0
      %120 = vmatpush1.msra.mxu0 0.0
      %121 = vmatprep.mubr.f32.mxu0 0.0
      %122 = vmatmul.mubr.f32.gmra.mrb[0].mxu0 %v52
      %v123 = vpop.f32.mrb[0].mxu0
      %v124 = vadd.f32 0.0, %v123
      %v125 = vpop.f32.mrb[0].mxu0
      %126 = vmatprep.mubr.f32.mxu0 0.0
      %127 = vmatmul.mubr.f32.gmra.mrb[0].mxu0 %v55
      %v128 = vpop.f32.mrb[0].mxu0
      %v129 = vadd.f32 0.0, %v128
      %v130 = vpop.f32.mrb[0].mxu0
      %131 = vdwg.mxu0
      %vm132 = vcmask 130048
      %133 = vst.msk [vmem:[#allocation2] sm:$0xff] %vm132, %v124
      %134 = vst.msk [vmem:[#allocation2 + $0x8] sm:$0xff] %vm132, %v129
      %137 = vrot.lane.b32.xlu0 %v124, 112
      %v138 = vpop.permute.xlu0 %137
      %139 = vrot.lane.b32.xlu0 %v129, 112
      %v140 = vpop.permute.xlu0 %139
      %143 = vst.msk [vmem:[#allocation3] sm:$0xff] %vm132, %v138
      %144 = vst.msk [vmem:[#allocation3 + $0x8] sm:$0xff] %vm132, %v140
      %145 = vrot.lane.b32.xlu0 %v124, 96
      %v146 = vpop.permute.xlu0 %145
      %147 = vrot.lane.b32.xlu0 %v129, 96
      %v148 = vpop.permute.xlu0 %147
      %151 = vst.msk [vmem:[#allocation4] sm:$0xff] %vm132, %v146
      %152 = vst.msk [vmem:[#allocation4 + $0x8] sm:$0xff] %vm132, %v148
      %vm153 = vcmask 7168
      %154 = vst.msk [vmem:[#allocation5] sm:$0xff] %vm153, -inf
      %155 = vst.msk [vmem:[#allocation5 + $0x8] sm:$0xff] %vm153, -inf
      %156 = vst.msk [vmem:[#allocation6] sm:$0xff] %vm153, 0.0
      %157 = vst.msk [vmem:[#allocation6 + $0x8] sm:$0xff] %vm153, 0.0
      %158 = vst.msk [vmem:[#allocation7] sm:$0xff] %vm132, 0.0
      %159 = vst.msk [vmem:[#allocation7 + $0x8] sm:$0xff] %vm132, 0.0
    $region21: #{tpu_custom_call.1} parent=1 // pred_fallthru
      _
    %s160 = smul.u32 0, 8
    %v161 = vld [vmem:[#allocation2] sm:$0xff]
    %v162 = vld [vmem:[#allocation2 + $0x8] sm:$0xff]
    %s163 = scalar_lea.vmem [#allocation3], %s160
    %v164 = vld [vmem:[%s163] sm:$0xff]
    %v165 = vld [vmem:[%s163 + $0x8] sm:$0xff]
    %s166 = scalar_lea.vmem [#allocation4], %s160
    %v167 = vld [vmem:[%s166] sm:$0xff]
    %v168 = vld [vmem:[%s166 + $0x8] sm:$0xff]
    %vm169 = vcmask 130048
    %v171 = vsel %vm169, %v161, 0
    %v174 = vsel %vm169, %v164, 0
    %176 = vmatprep.subr.mxu0 0.0
    %177 = vmatpush1.xpose.msra.mxu0 %v174
    %178 = vmatprep.subr.mxu0 0.0
    %179 = vmatpush1.xpose.msra.mxu0 0.0
    %180 = vmatprep.subr.mxu0 0.0
    %181 = vmatpush1.xpose.msra.mxu0 0.0
    %182 = vmatprep.subr.mxu0 0.0
    %183 = vmatpush1.xpose.msra.mxu0 0.0
    %184 = vmatprep.subr.mxu0 0.0
    %185 = vmatpush1.xpose.msra.mxu0 0.0
    %186 = vmatprep.subr.mxu0 0.0
    %187 = vmatpush1.xpose.msra.mxu0 0.0
    %188 = vmatprep.subr.mxu0 0.0
    %189 = vmatpush1.xpose.msra.mxu0 0.0
    %190 = vmatprep.subr.mxu0 0.0
    %191 = vmatpush1.xpose.msra.mxu0 0.0
    %192 = vmatprep.subr.mxu0 0.0
    %193 = vmatpush1.xpose.msra.mxu0 0.0
    %194 = vmatprep.subr.mxu0 0.0
    %195 = vmatpush1.xpose.msra.mxu0 0.0
    %196 = vmatprep.subr.mxu0 0.0
    %197 = vmatpush1.xpose.msra.mxu0 0.0
    %198 = vmatprep.subr.mxu0 0.0
    %199 = vmatpush1.xpose.msra.mxu0 0.0
    %200 = vmatprep.subr.mxu0 0.0
    %201 = vmatpush1.xpose.msra.mxu0 0.0
    %202 = vmatprep.subr.mxu0 0.0
    %203 = vmatpush1.xpose.msra.mxu0 0.0
    %204 = vmatprep.subr.mxu0 0.0
    %205 = vmatpush1.xpose.msra.mxu0 0.0
    %206 = vmatprep.subr.mxu0 0.0
    %207 = vmatpush1.xpose.msra.mxu0 0.0
    %208 = vmatprep.subr.mxu0 0.0
    %209 = vmatpush1.xpose.msra.mxu0 0.0
    %210 = vmatprep.subr.mxu0 0.0
    %211 = vmatpush1.xpose.msra.mxu0 0.0
    %212 = vmatprep.subr.mxu0 0.0
    %213 = vmatpush1.xpose.msra.mxu0 0.0
    %214 = vmatprep.subr.mxu0 0.0
    %215 = vmatpush1.xpose.msra.mxu0 0.0
    %216 = vmatprep.subr.mxu0 0.0
    %217 = vmatpush1.xpose.msra.mxu0 0.0
    %218 = vmatprep.subr.mxu0 0.0
    %219 = vmatpush1.xpose.msra.mxu0 0.0
    %220 = vmatprep.subr.mxu0 0.0
    %221 = vmatpush1.xpose.msra.mxu0 0.0
    %222 = vmatprep.subr.mxu0 0.0
    %223 = vmatpush1.xpose.msra.mxu0 0.0
    %224 = vmatprep.subr.mxu0 0.0
    %225 = vmatpush1.xpose.msra.mxu0 0.0
    %226 = vmatprep.subr.mxu0 0.0
    %227 = vmatpush1.xpose.msra.mxu0 0.0
    %228 = vmatprep.subr.mxu0 0.0
    %229 = vmatpush1.xpose.msra.mxu0 0.0
    %230 = vmatprep.subr.mxu0 0.0
    %231 = vmatpush1.xpose.msra.mxu0 0.0
    %232 = vmatprep.subr.mxu0 0.0
    %233 = vmatpush1.xpose.msra.mxu0 0.0
    %234 = vmatprep.subr.mxu0 0.0
    %235 = vmatpush1.xpose.msra.mxu0 0.0
    %236 = vmatprep.subr.mxu0 0.0
    %237 = vmatpush1.xpose.msra.mxu0 0.0
    %238 = vmatprep.subr.mxu0 0.0
    %239 = vmatpush1.xpose.msra.mxu0 0.0
    %240 = vmatprep.mubr.f32.mxu0 0.0
    %241 = vmatmul.mubr.f32.gmra.mrb[0].mxu0 %v171
    %v242 = vpop.f32.mrb[0].mxu0
    %v243 = vadd.f32 0.0, %v242
    %v244 = vpop.f32.mrb[0].mxu0
    %245 = vdwg.mxu0
    %v247 = vsel %vm169, %v162, 0
    %v250 = vsel %vm169, %v165, 0
    %252 = vmatprep.subr.mxu0 0.0
    %253 = vmatpush1.xpose.msra.mxu0 %v250
    %254 = vmatprep.subr.mxu0 0.0
    %255 = vmatpush1.xpose.msra.mxu0 0.0
    %256 = vmatprep.subr.mxu0 0.0
    %257 = vmatpush1.xpose.msra.mxu0 0.0
    %258 = vmatprep.subr.mxu0 0.0
    %259 = vmatpush1.xpose.msra.mxu0 0.0
    %260 = vmatprep.subr.mxu0 0.0
    %261 = vmatpush1.xpose.msra.mxu0 0.0
    %262 = vmatprep.subr.mxu0 0.0
    %263 = vmatpush1.xpose.msra.mxu0 0.0
    %264 = vmatprep.subr.mxu0 0.0
    %265 = vmatpush1.xpose.msra.mxu0 0.0
    %266 = vmatprep.subr.mxu0 0.0
    %267 = vmatpush1.xpose.msra.mxu0 0.0
    %268 = vmatprep.subr.mxu0 0.0
    %269 = vmatpush1.xpose.msra.mxu0 0.0
    %270 = vmatprep.subr.mxu0 0.0
    %271 = vmatpush1.xpose.msra.mxu0 0.0
    %272 = vmatprep.subr.mxu0 0.0
    %273 = vmatpush1.xpose.msra.mxu0 0.0
    %274 = vmatprep.subr.mxu0 0.0
    %275 = vmatpush1.xpose.msra.mxu0 0.0
    %276 = vmatprep.subr.mxu0 0.0
    %277 = vmatpush1.xpose.msra.mxu0 0.0
    %278 = vmatprep.subr.mxu0 0.0
    %279 = vmatpush1.xpose.msra.mxu0 0.0
    %280 = vmatprep.subr.mxu0 0.0
    %281 = vmatpush1.xpose.msra.mxu0 0.0
    %282 = vmatprep.subr.mxu0 0.0
    %283 = vmatpush1.xpose.msra.mxu0 0.0
    %284 = vmatprep.subr.mxu0 0.0
    %285 = vmatpush1.xpose.msra.mxu0 0.0
    %286 = vmatprep.subr.mxu0 0.0
    %287 = vmatpush1.xpose.msra.mxu0 0.0
    %288 = vmatprep.subr.mxu0 0.0
    %289 = vmatpush1.xpose.msra.mxu0 0.0
    %290 = vmatprep.subr.mxu0 0.0
    %291 = vmatpush1.xpose.msra.mxu0 0.0
    %292 = vmatprep.subr.mxu0 0.0
    %293 = vmatpush1.xpose.msra.mxu0 0.0
    %294 = vmatprep.subr.mxu0 0.0
    %295 = vmatpush1.xpose.msra.mxu0 0.0
    %296 = vmatprep.subr.mxu0 0.0
    %297 = vmatpush1.xpose.msra.mxu0 0.0
    %298 = vmatprep.subr.mxu0 0.0
    %299 = vmatpush1.xpose.msra.mxu0 0.0
    %300 = vmatprep.subr.mxu0 0.0
    %301 = vmatpush1.xpose.msra.mxu0 0.0
    %302 = vmatprep.subr.mxu0 0.0
    %303 = vmatpush1.xpose.msra.mxu0 0.0
    %304 = vmatprep.subr.mxu0 0.0
    %305 = vmatpush1.xpose.msra.mxu0 0.0
    %306 = vmatprep.subr.mxu0 0.0
    %307 = vmatpush1.xpose.msra.mxu0 0.0
    %308 = vmatprep.subr.mxu0 0.0
    %309 = vmatpush1.xpose.msra.mxu0 0.0
    %310 = vmatprep.subr.mxu0 0.0
    %311 = vmatpush1.xpose.msra.mxu0 0.0
    %312 = vmatprep.subr.mxu0 0.0
    %313 = vmatpush1.xpose.msra.mxu0 0.0
    %314 = vmatprep.subr.mxu0 0.0
    %315 = vmatpush1.xpose.msra.mxu0 0.0
    %316 = vmatprep.mubr.f32.mxu0 0.0
    %317 = vmatmul.mubr.f32.gmra.mrb[0].mxu0 %v247
    %v318 = vpop.f32.mrb[0].mxu0
    %v319 = vadd.f32 0.0, %v318
    %v320 = vpop.f32.mrb[0].mxu0
    %321 = vdwg.mxu0
    %v322 = vlaneseq
    %v323 = vshrl.u32 %v322, 7
    %v324 = vlaneseq
    %v325 = vand.u32 %v324, 127
    %v326 = vstv %s160
    %v327 = vadd.s32 %v325, %v326
    %vm328 = vcmp.le.s32.totalorder %v327, %v323
    %v329 = vsel %vm328, 1, 0
    %vm330 = vcmp.eq.s32.totalorder %v329, 1
    %v331 = vsel %vm330, %v243, -inf
    %v332 = vsel %vm330, %v319, -inf
    %v333 = vld [vmem:[#allocation5] sm:$0xff]
    %v334 = vld [vmem:[#allocation5 + $0x8] sm:$0xff]
    %vm335 = vcmask 64512
    %v336 = vsel %vm335, %v331, -inf
    %337 = vmax.xlane.f32.xlu0 %v336
    %v338 = vpop.xlane.xlu0 %337
    %v339 = vsel %vm335, %v332, -inf
    %340 = vmax.xlane.f32.xlu0 %v339
    %v341 = vpop.xlane.xlu0 %340
    %v342 = vmax.f32 %v333, %v338
    %v343 = vmax.f32 %v334, %v341
    %v344 = vsub.f32 %v333, %v342
    %v345 = vsub.f32 %v334, %v343
    %v346 = vmul.f32 %v344, 1.442695
    %v347 = vpow.pop %v346
    %v348 = vmul.f32 %v345, 1.442695
    %v349 = vpow.pop %v348
    %351 = vset.pattern.permute.xlu0 0
    %352 = vperm.xlu0 %351, %v342
    %v353 = vpop.permute.xlu0 %352
    %356 = vset.pattern.permute.xlu0 0
    %357 = vperm.xlu0 %356, %v343
    %v358 = vpop.permute.xlu0 %357
    %v360 = vsub.f32 %v331, %v353
    %v361 = vsub.f32 %v332, %v358
    %v362 = vmul.f32 %v360, 1.442695
    %v363 = vpow.pop %v362
    %v364 = vmul.f32 %v361, 1.442695
    %v365 = vpow.pop %v364
    %v366 = vld [vmem:[#allocation6] sm:$0xff]
    %v367 = vld [vmem:[#allocation6 + $0x8] sm:$0xff]
    %v368 = vmul.f32 %v347, %v366
    %v369 = vmul.f32 %v349, %v367
    %v370 = vsel %vm335, %v363, 0.0
    %371 = vadd.xlane.f32.xlu0 %v370
    %v372 = vpop.xlane.xlu0 %371
    %v373 = vsel %vm335, %v365, 0.0
    %374 = vadd.xlane.f32.xlu0 %v373
    %v375 = vpop.xlane.xlu0 %374
    %v376 = vadd.f32 %v368, %v372
    %v377 = vadd.f32 %v369, %v375
    %vm378 = vcmask 7168
    %379 = vst.msk [vmem:[#allocation6] sm:$0xff] %vm378, %v376
    %380 = vst.msk [vmem:[#allocation6 + $0x8] sm:$0xff] %vm378, %v377
    %v381 = vld [vmem:[#allocation7] sm:$0xff]
    %v382 = vld [vmem:[#allocation7 + $0x8] sm:$0xff]
    %384 = vset.pattern.permute.xlu0 0
    %385 = vperm.xlu0 %384, %v347
    %v386 = vpop.permute.xlu0 %385
    %389 = vset.pattern.permute.xlu0 0
    %390 = vperm.xlu0 %389, %v349
    %v391 = vpop.permute.xlu0 %390
    %v393 = vmul.f32 %v386, %v381
    %v394 = vmul.f32 %v391, %v382
    %v396 = vsel %vm335, %v363, 0
    %398 = vmatprep.subr.mxu0 0.0
    %399 = vmatpush1.msra.mxu0 %v167
    %400 = vmatprep.subr.mxu0 0.0
    %401 = vmatpush1.msra.mxu0 0.0
    %402 = vmatprep.subr.mxu0 0.0
    %403 = vmatpush1.msra.mxu0 0.0
    %404 = vmatprep.subr.mxu0 0.0
    %405 = vmatpush1.msra.mxu0 0.0
    %406 = vmatprep.subr.mxu0 0.0
    %407 = vmatpush1.msra.mxu0 0.0
    %408 = vmatprep.subr.mxu0 0.0
    %409 = vmatpush1.msra.mxu0 0.0
    %410 = vmatprep.subr.mxu0 0.0
    %411 = vmatpush1.msra.mxu0 0.0
    %412 = vmatprep.subr.mxu0 0.0
    %413 = vmatpush1.msra.mxu0 0.0
    %414 = vmatprep.subr.mxu0 0.0
    %415 = vmatpush1.msra.mxu0 0.0
    %416 = vmatprep.subr.mxu0 0.0
    %417 = vmatpush1.msra.mxu0 0.0
    %418 = vmatprep.subr.mxu0 0.0
    %419 = vmatpush1.msra.mxu0 0.0
    %420 = vmatprep.subr.mxu0 0.0
    %421 = vmatpush1.msra.mxu0 0.0
    %422 = vmatprep.subr.mxu0 0.0
    %423 = vmatpush1.msra.mxu0 0.0
    %424 = vmatprep.subr.mxu0 0.0
    %425 = vmatpush1.msra.mxu0 0.0
    %426 = vmatprep.subr.mxu0 0.0
    %427 = vmatpush1.msra.mxu0 0.0
    %428 = vmatprep.subr.mxu0 0.0
    %429 = vmatpush1.msra.mxu0 0.0
    %430 = vmatprep.subr.mxu0 0.0
    %431 = vmatpush1.msra.mxu0 0.0
    %432 = vmatprep.subr.mxu0 0.0
    %433 = vmatpush1.msra.mxu0 0.0
    %434 = vmatprep.subr.mxu0 0.0
    %435 = vmatpush1.msra.mxu0 0.0
    %436 = vmatprep.subr.mxu0 0.0
    %437 = vmatpush1.msra.mxu0 0.0
    %438 = vmatprep.subr.mxu0 0.0
    %439 = vmatpush1.msra.mxu0 0.0
    %440 = vmatprep.subr.mxu0 0.0
    %441 = vmatpush1.msra.mxu0 0.0
    %442 = vmatprep.subr.mxu0 0.0
    %443 = vmatpush1.msra.mxu0 0.0
    %444 = vmatprep.subr.mxu0 0.0
    %445 = vmatpush1.msra.mxu0 0.0
    %446 = vmatprep.subr.mxu0 0.0
    %447 = vmatpush1.msra.mxu0 0.0
    %448 = vmatprep.subr.mxu0 0.0
    %449 = vmatpush1.msra.mxu0 0.0
    %450 = vmatprep.subr.mxu0 0.0
    %451 = vmatpush1.msra.mxu0 0.0
    %452 = vmatprep.subr.mxu0 0.0
    %453 = vmatpush1.msra.mxu0 0.0
    %454 = vmatprep.subr.mxu0 0.0
    %455 = vmatpush1.msra.mxu0 0.0
    %456 = vmatprep.subr.mxu0 0.0
    %457 = vmatpush1.msra.mxu0 0.0
    %458 = vmatprep.subr.mxu0 0.0
    %459 = vmatpush1.msra.mxu0 0.0
    %460 = vmatprep.subr.mxu0 0.0
    %461 = vmatpush1.msra.mxu0 0.0
    %462 = vmatprep.mubr.f32.mxu0 0.0
    %463 = vmatmul.mubr.f32.gmra.mrb[0].mxu0 %v396
    %v464 = vpop.f32.mrb[0].mxu0
    %v465 = vadd.f32 0.0, %v464
    %v466 = vpop.f32.mrb[0].mxu0
    %467 = vdwg.mxu0
    %v469 = vsel %vm335, %v365, 0
    %471 = vmatprep.subr.mxu0 0.0
    %472 = vmatpush1.msra.mxu0 %v168
    %473 = vmatprep.subr.mxu0 0.0
    %474 = vmatpush1.msra.mxu0 0.0
    %475 = vmatprep.subr.mxu0 0.0
    %476 = vmatpush1.msra.mxu0 0.0
    %477 = vmatprep.subr.mxu0 0.0
    %478 = vmatpush1.msra.mxu0 0.0
    %479 = vmatprep.subr.mxu0 0.0
    %480 = vmatpush1.msra.mxu0 0.0
    %481 = vmatprep.subr.mxu0 0.0
    %482 = vmatpush1.msra.mxu0 0.0
    %483 = vmatprep.subr.mxu0 0.0
    %484 = vmatpush1.msra.mxu0 0.0
    %485 = vmatprep.subr.mxu0 0.0
    %486 = vmatpush1.msra.mxu0 0.0
    %487 = vmatprep.subr.mxu0 0.0
    %488 = vmatpush1.msra.mxu0 0.0
    %489 = vmatprep.subr.mxu0 0.0
    %490 = vmatpush1.msra.mxu0 0.0
    %491 = vmatprep.subr.mxu0 0.0
    %492 = vmatpush1.msra.mxu0 0.0
    %493 = vmatprep.subr.mxu0 0.0
    %494 = vmatpush1.msra.mxu0 0.0
    %495 = vmatprep.subr.mxu0 0.0
    %496 = vmatpush1.msra.mxu0 0.0
    %497 = vmatprep.subr.mxu0 0.0
    %498 = vmatpush1.msra.mxu0 0.0
    %499 = vmatprep.subr.mxu0 0.0
    %500 = vmatpush1.msra.mxu0 0.0
    %501 = vmatprep.subr.mxu0 0.0
    %502 = vmatpush1.msra.mxu0 0.0
    %503 = vmatprep.subr.mxu0 0.0
    %504 = vmatpush1.msra.mxu0 0.0
    %505 = vmatprep.subr.mxu0 0.0
    %506 = vmatpush1.msra.mxu0 0.0
    %507 = vmatprep.subr.mxu0 0.0
    %508 = vmatpush1.msra.mxu0 0.0
    %509 = vmatprep.subr.mxu0 0.0
    %510 = vmatpush1.msra.mxu0 0.0
    %511 = vmatprep.subr.mxu0 0.0
    %512 = vmatpush1.msra.mxu0 0.0
    %513 = vmatprep.subr.mxu0 0.0
    %514 = vmatpush1.msra.mxu0 0.0
    %515 = vmatprep.subr.mxu0 0.0
    %516 = vmatpush1.msra.mxu0 0.0
    %517 = vmatprep.subr.mxu0 0.0
    %518 = vmatpush1.msra.mxu0 0.0
    %519 = vmatprep.subr.mxu0 0.0
    %520 = vmatpush1.msra.mxu0 0.0
    %521 = vmatprep.subr.mxu0 0.0
    %522 = vmatpush1.msra.mxu0 0.0
    %523 = vmatprep.subr.mxu0 0.0
    %524 = vmatpush1.msra.mxu0 0.0
    %525 = vmatprep.subr.mxu0 0.0
    %526 = vmatpush1.msra.mxu0 0.0
    %527 = vmatprep.subr.mxu0 0.0
    %528 = vmatpush1.msra.mxu0 0.0
    %529 = vmatprep.subr.mxu0 0.0
    %530 = vmatpush1.msra.mxu0 0.0
    %531 = vmatprep.subr.mxu0 0.0
    %532 = vmatpush1.msra.mxu0 0.0
    %533 = vmatprep.subr.mxu0 0.0
    %534 = vmatpush1.msra.mxu0 0.0
    %535 = vmatprep.mubr.f32.mxu0 0.0
    %536 = vmatmul.mubr.f32.gmra.mrb[0].mxu0 %v469
    %v537 = vpop.f32.mrb[0].mxu0
    %v538 = vadd.f32 0.0, %v537
    %v539 = vpop.f32.mrb[0].mxu0
    %540 = vdwg.mxu0
    %v541 = vadd.f32 %v393, %v465
    %v542 = vadd.f32 %v394, %v538
    %543 = vst.msk [vmem:[#allocation7] sm:$0xff] %vm169, %v541
    %544 = vst.msk [vmem:[#allocation7 + $0x8] sm:$0xff] %vm169, %v542
    %545 = vst.msk [vmem:[#allocation5] sm:$0xff] %vm378, %v342
    %546 = vst.msk [vmem:[#allocation5 + $0x8] sm:$0xff] %vm378, %v343
    // Predicated region
    $region22: #{tpu_custom_call.1} parent=1 // pred_check
      %p547 = pneg %p40
    $region23: #{tpu_custom_call.1} parent=1 // pred_check_branch
      %549 = sbr.rel (%p547) target = $region25
    $region24: #{tpu_custom_call.1} parent=1 // pred_region
      %v550 = vld [vmem:[#allocation6] sm:$0xff]
      %v551 = vld [vmem:[#allocation6 + $0x8] sm:$0xff]
      %v552 = vrcp.pop %v550
      %v553 = vrcp.pop %v551
      %v554 = vld [vmem:[#allocation7] sm:$0xff]
      %v555 = vld [vmem:[#allocation7 + $0x8] sm:$0xff]
      %557 = vset.pattern.permute.xlu0 0
      %558 = vperm.xlu0 %557, %v552
      %v559 = vpop.permute.xlu0 %558
      %562 = vset.pattern.permute.xlu0 0
      %563 = vperm.xlu0 %562, %v553
      %v564 = vpop.permute.xlu0 %563
      %v566 = vmul.f32 %v554, %v559
      %v567 = vmul.f32 %v555, %v564
      %568 = vst.msk [vmem:[#allocation13] sm:$0xff] %vm169, %v566
      %569 = vst.msk [vmem:[#allocation13 + $0x8] sm:$0xff] %vm169, %v567
    $region25: #{tpu_custom_call.1} parent=1 // pred_fallthru
      _
    // Predicated region
    $region26: #{tpu_custom_call.1} parent=1 // pred_check
      _
    $region27: #{tpu_custom_call.1} parent=1 // pred_check_branch
      %571 = sbr.rel (0) target = $region29
    $region28: #{tpu_custom_call.1} parent=1 // pred_region
      %s573 = ssub.s32 256, 256
      %574 = vsyncadd [#allocation10], %s573
      %s575 = sshll.u32 [#allocation13], 4
      %s576 = int_to_ptr.vmem [resolvable:$true] %s575
      %581 = dma.vmem_to_hbm [thread:$0]  %s576, 256, %s2, [#allocation10], 128, 128, 8
    $region29: #{tpu_custom_call.1} parent=1 // pred_fallthru
      _
    // Predicated region
    $region30: #{tpu_custom_call.1} parent=1 // pred_check
      _
    $region31: #{tpu_custom_call.1} parent=1 // pred_check_branch
      %583 = sbr.rel (0) target = $region33
    $region32: #{tpu_custom_call.1} parent=1 // pred_region
      %584 = dma.done [#allocation10], 256
    $region33: #{tpu_custom_call.1} parent=1 // pred_fallthru
      _
    %585 = vsyncpa [#allocation9], 1
    %586 = vsyncpa [#allocation12], 1
    %587 = vsyncpa [#allocation10], 1

</llo_original>
